<compile_context>
chip_gen: v5e
topology: v5e:2x2
jax: 0.10.0
libtpu: 0.0.40
codegen_flags: <defaults>
</compile_context>

<pallas_src>
import jax
import jax.numpy as jnp
from jax.experimental import pallas as pl
from jax.experimental.pallas import tpu as pltpu

THRESHOLD = 2.0

# Rough total VMEM footprint (bytes) below which we skip the grid entirely.
# Conservative for v5e's 16 MiB default scoped limit and v7x's 32 MiB.
_UNGRIDDED_VMEM_BYTES = 6 * 1024 * 1024


# ---------------------------------------------------------------------------
# 1) Faithful single-gate forward (exactly MPNeuronAND.forward).
#    Pure scalar path: inputs, weights and output all live in SMEM.
# ---------------------------------------------------------------------------
def _mp_neuron_and_scalar_kernel(x_ref, w_ref, o_ref):
    # weighted_sum = x[0]*w[0] + x[1]*w[1]   (scalar ALU only)
    ws = x_ref[0, 0] * w_ref[0, 0] + x_ref[0, 1] * w_ref[0, 1]
    # step activation: 1.0 if ws >= threshold else 0.0
    o_ref[0, 0] = jnp.where(ws >= THRESHOLD, jnp.float32(1.0), jnp.float32(0.0))


def mp_neuron_and(x, weights):
    """x: (2,) float32 inputs, weights: (2,) float32. Returns (1, 1) float32.

    Note: the PyTorch forward returns a Python scalar; callers needing a
    scalar should index [0, 0] (kept as a buffer to avoid an extra XLA slice).
    """
    x2d = x.reshape(1, 2).astype(jnp.float32)
    w2d = weights.reshape(1, 2).astype(jnp.float32)
    return pl.pallas_call(
        _mp_neuron_and_scalar_kernel,
        out_shape=jax.ShapeDtypeStruct((1, 1), jnp.float32),
        in_specs=[
            pl.BlockSpec(memory_space=pltpu.SMEM),
            pl.BlockSpec(memory_space=pltpu.SMEM),
        ],
        out_specs=pl.BlockSpec(memory_space=pltpu.SMEM),
    )(x2d, w2d)


# ---------------------------------------------------------------------------
# 2) Batched throughput variant on planar inputs (2, R, C):
#      x_planar[0] = first input of every gate, x_planar[1] = second input.
#    Lane-dense, sublane-aligned layout; weights stay a tiny SMEM scalar table.
# ---------------------------------------------------------------------------
def _mp_neuron_and_planar_kernel(w_ref, x_ref, o_ref):
    w0 = w_ref[0, 0]
    w1 = w_ref[0, 1]
    ws = x_ref[0] * w0 + x_ref[1] * w1          # two VPU FMAs, no XLU reduce
    o_ref[...] = jnp.where(ws >= THRESHOLD,
                           jnp.float32(1.0), jnp.float32(0.0)).astype(o_ref.dtype)


def _pick_tile(dim, pref, align):
    """Largest multiple of `align` that divides `dim` and is <= `pref`;
    falls back to the full dim (full-extent blocks are always legal)."""
    if dim <= pref:
        return dim
    t = (pref // align) * align
    while t >= align:
        if dim % t == 0:
            return t
        t -= align
    return dim


def mp_neuron_and_batched(x_planar, weights, *, out_dtype=jnp.float32,
                          tile=None,
                          max_ungridded_bytes=_UNGRIDDED_VMEM_BYTES):
    """Evaluate R*C independent AND gates.

    x_planar: (2, R, C) float32 with R % 8 == 0 and C % 128 == 0.
    weights:  (2,) float32.
    Returns (R, C) array of `out_dtype` with 1/0 per gate.
    """
    assert x_planar.ndim == 3 and x_planar.shape[0] == 2, x_planar.shape
    _, R, C = x_planar.shape
    # TODO(synk): no padding/masking path for ragged R/C; callers must pad.
    assert R % 8 == 0 and C % 128 == 0, (R, C)

    x_planar = x_planar.astype(jnp.float32)
    w2d = weights.reshape(1, 2).astype(jnp.float32)
    out_shape = jax.ShapeDtypeStruct((R, C), out_dtype)

    total_bytes = 2 * R * C * 4 + R * C * jnp.dtype(out_dtype).itemsize
    if tile is None and total_bytes <= max_ungridded_bytes:
        # Un-gridded: whole arrays as single VMEM blocks -> no per-step
        # overhead, no pipeline fill/drain.
        return pl.pallas_call(
            _mp_neuron_and_planar_kernel,
            out_shape=out_shape,
            in_specs=[
                pl.BlockSpec(memory_space=pltpu.SMEM),   # weights (whole)
                pl.BlockSpec(memory_space=pltpu.VMEM),   # x planes (whole)
            ],
            out_specs=pl.BlockSpec(memory_space=pltpu.VMEM),
        )(w2d, x_planar)

    # Gridded: large sublane x lane slabs, auto double-buffered by BlockSpec;
    # both grid axes are "parallel" so v7x megacore can split the rows.
    if tile is not None:
        tr, tc = tile
    else:
        tr, tc = _pick_tile(R, 512, 8), _pick_tile(C, 512, 128)
    assert R % tr == 0 and C % tc == 0 and tr % 8 == 0 and tc % 128 == 0
    grid = (R // tr, C // tc)
    return pl.pallas_call(
        _mp_neuron_and_planar_kernel,
        out_shape=out_shape,
        grid=grid,
        in_specs=[
            pl.BlockSpec(memory_space=pltpu.SMEM),              # weights
            pl.BlockSpec((2, tr, tc), lambda i, j: (0, i, j)),  # x slab
        ],
        out_specs=pl.BlockSpec((tr, tc), lambda i, j: (i, j)),
        compiler_params=pltpu.CompilerParams(
            dimension_semantics=("parallel", "parallel"),
            # ~3 MiB of pipelined buffers at the default 512x512 tiles; set
            # the scoped limit explicitly so the same code stays safe on
            # v5e (16 MiB default scoped) and v7x (32 MiB scoped / 64 MiB phys).
            vmem_limit_bytes=32 * 1024 * 1024,
        ),
    )(w2d, x_planar)


if __name__ == "__main__":
    key = jax.random.PRNGKey(0)
    k_single, k_small, k_grid = jax.random.split(key, 3)

    # Deterministic parameter init matching torch.nn.Parameter(torch.ones(2)).
    weights = jnp.ones((2,), dtype=jnp.float32)

    # --- 1) single-gate forward (the module as written), x is (2,) ---------
    x = jax.random.bernoulli(k_single, 0.5, (2,)).astype(jnp.float32)
    out = jax.block_until_ready(mp_neuron_and(x, weights))
    ref = jnp.where(jnp.sum(x * weights) >= THRESHOLD, 1.0, 0.0)
    assert float(out[0, 0]) == float(ref), (float(out[0, 0]), float(ref))

    # --- 2) batched planar path, small shape -> un-gridded single blocks ---
    xs = jax.random.bernoulli(k_small, 0.5, (2, 8, 128)).astype(jnp.float32)
    outs = jax.block_until_ready(mp_neuron_and_batched(xs, weights))
    refs = jnp.where(xs[0] * weights[0] + xs[1] * weights[1] >= THRESHOLD,
                     1.0, 0.0)
    assert outs.shape == (8, 128) and bool(jnp.all(outs == refs))

    # --- 3) gridded slab path (small forced tiles to exercise the 2-D grid)
    xg = jax.random.bernoulli(k_grid, 0.5, (2, 16, 256)).astype(jnp.float32)
    outg = jax.block_until_ready(
        mp_neuron_and_batched(xg, weights, tile=(8, 128)))
    refg = jnp.where(xg[0] * weights[0] + xg[1] * weights[1] >= THRESHOLD,
                     1.0, 0.0)
    assert outg.shape == (16, 256) and bool(jnp.all(outg == refg))

    print("KERNEL_OK")
</pallas_src>

<mosaic_0001>
module attributes {stable_mosaic.version = 11 : i64} {
  func.func @_mp_neuron_and_scalar_kernel(%arg0: memref<1x2xf32, #tpu.memory_space<smem>>, %arg1: memref<1x2xf32, #tpu.memory_space<smem>>, %arg2: memref<1x1xf32, #tpu.memory_space<smem>>) attributes {dimension_semantics = [], scalar_prefetch = 0 : i64, scratch_operands = 0 : i64, tpu.core_type = #tpu.core_type<tc>} {
    %c0 = arith.constant 0 : index
    %c0_0 = arith.constant 0 : index
    %0 = memref.load %arg0[%c0, %c0_0] : memref<1x2xf32, #tpu.memory_space<smem>>
    %c0_1 = arith.constant 0 : index
    %c0_2 = arith.constant 0 : index
    %1 = memref.load %arg1[%c0_1, %c0_2] : memref<1x2xf32, #tpu.memory_space<smem>>
    %2 = arith.mulf %0, %1 : f32
    %c0_3 = arith.constant 0 : index
    %c1 = arith.constant 1 : index
    %3 = memref.load %arg0[%c0_3, %c1] : memref<1x2xf32, #tpu.memory_space<smem>>
    %c0_4 = arith.constant 0 : index
    %c1_5 = arith.constant 1 : index
    %4 = memref.load %arg1[%c0_4, %c1_5] : memref<1x2xf32, #tpu.memory_space<smem>>
    %5 = arith.mulf %3, %4 : f32
    %6 = arith.addf %2, %5 : f32
    %cst = arith.constant 2.000000e+00 : f32
    %7 = arith.cmpf oge, %6, %cst : f32
    %cst_6 = arith.constant 1.000000e+00 : f32
    %cst_7 = arith.constant 0.000000e+00 : f32
    %8 = arith.select %7, %cst_6, %cst_7 : f32
    %c0_8 = arith.constant 0 : index
    %c0_9 = arith.constant 0 : index
    %9 = memref.load %arg2[%c0_8, %c0_9] : memref<1x1xf32, #tpu.memory_space<smem>>
    memref.store %8, %arg2[%c0_8, %c0_9] : memref<1x1xf32, #tpu.memory_space<smem>>
    return
  }
}

</mosaic_0001>

<llo_original>
// kernel: tpu_custom_call.1
$region0: #{tpu_custom_call.1}
  #allocation0 [shape = 'u32[]', space=smem, size = 0x4, offset = 0x4, fixed_abs, tag = 'smem constant byte address 0x4 - core index']
  #allocation1 [shape = 'u32[72,128]{1,0:T(1,128)}', space=vmem, size = 0x9000, scoped, tag = 'internal scratch']
  %s0 = inlined_call_operand.hbm [shape: f32[1,2], index: 0, kind: input, shape index: {}]
  %s1 = inlined_call_operand.hbm [shape: f32[1,2], index: 1, kind: input, shape index: {}]
  %s2 = inlined_call_operand.hbm [shape: f32[1,1], index: 2, kind: output, shape index: {}]
  %s3 = sld [smem:[#allocation0]]
  $region26: #{tpu_custom_call.1} parent=0
    _
  %s5 = ssub.s32 1, %s3
  %s6 = scalar_select 0, %s5, %s3
  $region1: #{tpu_custom_call.1} parent=0
    #allocation2 [shape = 'u8[512]{0}', space=smem, size = 0x200, scoped, tag = 'input window, operand 0, single buffered']
    #allocation3 [shape = 's32[1]{0}', space=sflag, size = 0x4, scoped, tag = 'scoped memory for tpu_custom_call.1']
    #allocation4 [shape = 's32[1]{0}', space=sflag, size = 0x4, scoped, tag = 'scoped memory for tpu_custom_call.1']
    #allocation5 [shape = 'u8[512]{0}', space=smem, size = 0x200, scoped, tag = 'input window, operand 1, single buffered']
    #allocation6 [shape = 's32[1]{0}', space=sflag, size = 0x4, scoped, tag = 'scoped memory for tpu_custom_call.1']
    #allocation7 [shape = 'u8[512]{0}', space=smem, size = 0x200, scoped, tag = 'output window, operand 0, single buffered']
    %7 = vsyncpa [#allocation3], 0
    %8 = vsyncpa [#allocation6], 0
    %9 = vsyncpa [#allocation4], 0
    // Predicated region
    $region2: #{tpu_custom_call.1} parent=1 // pred_check
      _
    $region3: #{tpu_custom_call.1} parent=1 // pred_check_branch
      %11 = sbr.rel (0) target = $region5
    $region4: #{tpu_custom_call.1} parent=1 // pred_region
      %13 = vsyncadd [#allocation3], 0
      %s15 = sshll.u32 %s0, 4
      %s16 = int_to_ptr.hbm [resolvable:$true] %s15
      %18 = dma.hbm_to_smem %s16, 16, [#allocation2], [#allocation3]
    $region5: #{tpu_custom_call.1} parent=1 // pred_fallthru
      _
    // Predicated region
    $region6: #{tpu_custom_call.1} parent=1 // pred_check
      _
    $region7: #{tpu_custom_call.1} parent=1 // pred_check_branch
      %20 = sbr.rel (0) target = $region9
    $region8: #{tpu_custom_call.1} parent=1 // pred_region
      %22 = vsyncadd [#allocation6], 0
      %s24 = sshll.u32 %s1, 4
      %s25 = int_to_ptr.hbm [resolvable:$true] %s24
      %27 = dma.hbm_to_smem %s25, 16, [#allocation5], [#allocation6]
    $region9: #{tpu_custom_call.1} parent=1 // pred_fallthru
      _
    // Predicated region
    $region10: #{tpu_custom_call.1} parent=1 // pred_check
      _
    $region11: #{tpu_custom_call.1} parent=1 // pred_check_branch
      %29 = sbr.rel (0) target = $region13
    $region12: #{tpu_custom_call.1} parent=1 // pred_region
      %31 = dma.done [#allocation3], 16
    $region13: #{tpu_custom_call.1} parent=1 // pred_fallthru
      _
    // Predicated region
    $region14: #{tpu_custom_call.1} parent=1 // pred_check
      _
    $region15: #{tpu_custom_call.1} parent=1 // pred_check_branch
      %33 = sbr.rel (0) target = $region17
    $region16: #{tpu_custom_call.1} parent=1 // pred_region
      %35 = dma.done [#allocation6], 16
    $region17: #{tpu_custom_call.1} parent=1 // pred_fallthru
      _
    %36 = sfence
    %s37 = sld [smem:[#allocation2]]
    %s38 = sld [smem:[#allocation5]]
    %s39 = smul.f32 %s37, %s38
    %s40 = sld [smem:[#allocation2 + $0x1]]
    %s41 = sld [smem:[#allocation5 + $0x1]]
    %s42 = smul.f32 %s40, %s41
    %s43 = sadd.f32 %s39, %s42
    %p44 = scmp.ge.f32.partialorder %s43, 2.0
    %s45 = scalar_select %p44, 1.0, 0.0
    %s46 = scalar_lea.smem [#allocation7], 0
    %47 = sst [smem:[%s46]] %s45
    // Predicated region
    $region18: #{tpu_custom_call.1} parent=1 // pred_check
      _
    $region19: #{tpu_custom_call.1} parent=1 // pred_check_branch
      %49 = sbr.rel (0) target = $region21
    $region20: #{tpu_custom_call.1} parent=1 // pred_region
      %51 = vsyncadd [#allocation4], 0
      %s53 = sshll.u32 %s2, 4
      %s54 = int_to_ptr.hbm [resolvable:$true] %s53
      %56 = dma.smem_to_hbm [#allocation7], 16, %s54, [#allocation4]
    $region21: #{tpu_custom_call.1} parent=1 // pred_fallthru
      _
    // Predicated region
    $region22: #{tpu_custom_call.1} parent=1 // pred_check
      _
    $region23: #{tpu_custom_call.1} parent=1 // pred_check_branch
      %58 = sbr.rel (0) target = $region25
    $region24: #{tpu_custom_call.1} parent=1 // pred_region
      %60 = dma.done [#allocation4], 16
    $region25: #{tpu_custom_call.1} parent=1 // pred_fallthru
      _
    %61 = sfence
    %62 = vsyncpa [#allocation3], 1
    %63 = vsyncpa [#allocation6], 1
    %64 = vsyncpa [#allocation4], 1

</llo_original>
